<compile_context>
chip_gen: v5e
topology: v5e:2x2
jax: 0.10.0
libtpu: 0.0.40
codegen_flags: <defaults>
</compile_context>

<pallas_src>
import functools

import jax
import jax.numpy as jnp
from jax.experimental import pallas as pl
from jax.experimental.pallas import tpu as pltpu


_SMEM = pl.BlockSpec(memory_space=pltpu.MemorySpace.SMEM)

# Per-(C, HW) slab cap for the fused single-pass path.  Input + output are
# each double-buffered, so the kernel needs ~4x this plus headroom -- safe for
# the scoped-VMEM limits we set on v5e / v6e / v7x.
_FUSED_SLAB_CAP = 6 * 1024 * 1024
# Byte targets for the streaming two-pass fallback.
_P1_TILE_BYTES = 4 * 1024 * 1024      # phase 1 streams a single operand
_P2_TILE_BYTES = 2 * 1024 * 1024      # phase 2 double-buffers input + output


def _round_up(x, m):
    return -(-x // m) * m


def _divisor_tile(hw, target):
    """Largest multiple-of-128 divisor of hw that is <= target (hw % 128 == 0)."""
    t = min(target, hw)
    t -= t % 128
    while t > 128:
        if hw % t == 0:
            return t
        t -= 128
    return 128


def _clamp_vmem(nbytes):
    return int(min(max(nbytes, 16 * 1024 * 1024), 48 * 1024 * 1024))


# --------------------------------------------------------------------------
# Fused single-pass kernel: one full (C, HW) batch slab per grid step.
# --------------------------------------------------------------------------
def _hebing_fused_kernel(x_ref, wk_ref, bk_ref, wt_ref, bt_ref, o_ref, *, inv_hw):
    x = x_ref[...].astype(jnp.float32)                                   # (C, HW)

    # tongdao: global average pool -> 1x1 conv (C -> 1) -> ReLU (scalar gate).
    ch_sum = jnp.sum(x, axis=1, keepdims=True)                           # (C, 1)
    g = jnp.sum(ch_sum * wt_ref[...], axis=0, keepdims=True) * inv_hw + bt_ref[0]
    g = jnp.maximum(g, 0.0)                                              # (1, 1)

    # kongjian: per-pixel 1x1 conv over channels -> sigmoid (VPU + sublane
    # reduce; no MXU matvec needed).
    s = jnp.sum(x * wk_ref[...], axis=0, keepdims=True) + bk_ref[0]      # (1, HW)
    s = jax.nn.sigmoid(s)

    o_ref[...] = jnp.maximum(x * g, x * s).astype(o_ref.dtype)


# --------------------------------------------------------------------------
# Two-pass fallback kernels (very large H*W).
# --------------------------------------------------------------------------
def _tongdao_reduce_kernel(x_ref, wt_ref, bt_ref, gate_ref, acc_ref, *, inv_hw):
    # x_ref: (C, T1) one HW tile of one batch element.
    t = pl.program_id(1)

    @pl.when(t == 0)
    def _():
        acc_ref[...] = jnp.zeros_like(acc_ref)

    # Accumulate partial per-channel *means* (scaling each tile by 1/HW keeps
    # the accumulator well conditioned for very large HW).  Zero-padded
    # columns contribute nothing, so the true 1/HW stays correct.
    x = x_ref[...].astype(jnp.float32)
    acc_ref[...] += jnp.sum(x, axis=1, keepdims=True) * inv_hw            # (C, 1)

    @pl.when(t == pl.num_programs(1) - 1)
    def _():
        g = jnp.sum(acc_ref[...] * wt_ref[...], axis=0, keepdims=True) + bt_ref[0]
        gate_ref[...] = jnp.maximum(g, 0.0)


def _hebing_apply_kernel(x_ref, wk_ref, bk_ref, gate_ref, o_ref):
    # x_ref/o_ref: (C, T2); gate_ref: SMEM (B,) per-batch tongdao gate.
    b = pl.program_id(0)
    x = x_ref[...].astype(jnp.float32)
    s = jnp.sum(x * wk_ref[...], axis=0, keepdims=True) + bk_ref[0]       # (1, T2)
    s = jax.nn.sigmoid(s)
    o_ref[...] = jnp.maximum(x * gate_ref[b], x * s).astype(o_ref.dtype)


# --------------------------------------------------------------------------
# Wrapper
# --------------------------------------------------------------------------
def hebing_forward(x_nchw, wk, bk, wt, bt):
    """x_nchw: (B, C, H, W). Returns (B, C, H, W) in the same dtype."""
    B, C, H, W = x_nchw.shape
    HW = H * W
    dtype = x_nchw.dtype
    itemsize = jnp.dtype(dtype).itemsize

    x = x_nchw.reshape(B, C, HW)                      # free view, NCHW kept
    wk_col = wk.reshape(C, 1).astype(jnp.float32)
    wt_col = wt.reshape(C, 1).astype(jnp.float32)
    bk1 = bk.reshape(1).astype(jnp.float32)
    bt1 = bt.reshape(1).astype(jnp.float32)

    elems = B * C * HW
    slab_bytes = C * _round_up(HW, 128) * itemsize

    # ---- Fused single-pass path --------------------------------------------
    if slab_bytes <= _FUSED_SLAB_CAP:
        out = pl.pallas_call(
            functools.partial(_hebing_fused_kernel, inv_hw=1.0 / HW),
            out_shape=jax.ShapeDtypeStruct((B, C, HW), dtype),
            grid_spec=pltpu.PrefetchScalarGridSpec(
                num_scalar_prefetch=0,
                grid=(B,),
                in_specs=[
                    pl.BlockSpec((None, C, HW), lambda b: (b, 0, 0)),
                    pl.BlockSpec((C, 1), lambda b: (0, 0)),
                    _SMEM,                                    # bk
                    pl.BlockSpec((C, 1), lambda b: (0, 0)),
                    _SMEM,                                    # bt
                ],
                out_specs=pl.BlockSpec((None, C, HW), lambda b: (b, 0, 0)),
            ),
            compiler_params=pltpu.CompilerParams(
                dimension_semantics=("parallel",),
                vmem_limit_bytes=_clamp_vmem(4 * slab_bytes + (4 << 20))),
            cost_estimate=pl.CostEstimate(
                flops=5 * elems,
                transcendentals=B * HW,
                bytes_accessed=2 * elems * itemsize),
        )(x, wk_col, bk1, wt_col, bt1)
        return out.reshape(B, C, H, W)

    # ---- Streaming two-pass fallback ---------------------------------------
    # Byte-targeted, lane-dense tiles that exactly divide (possibly padded) HW.
    p1_lanes = max(128, (_P1_TILE_BYTES // (C * itemsize)) // 128 * 128)
    p2_lanes = max(128, (_P2_TILE_BYTES // (C * itemsize)) // 128 * 128)
    if HW % 128 == 0:
        t2 = _divisor_tile(HW, p2_lanes)
        t1 = _divisor_tile(HW, max(t2, p1_lanes))
        hw_pad = HW
    else:
        # Padding materializes a copy anyway, so pad straight to a multiple of
        # the larger tile to keep both passes exactly tiled and lane-dense.
        t2 = p2_lanes
        t1 = 2 * t2
        hw_pad = _round_up(HW, t1)
    if hw_pad != HW:
        x = jnp.pad(x, ((0, 0), (0, 0), (0, hw_pad - HW)))
    n1 = hw_pad // t1
    n2 = hw_pad // t2

    # Phase 1: global average pool + fc + relu -> per-batch tongdao gate.
    gate = pl.pallas_call(
        functools.partial(_tongdao_reduce_kernel, inv_hw=1.0 / HW),
        out_shape=jax.ShapeDtypeStruct((B, 1, 1), jnp.float32),
        grid_spec=pltpu.PrefetchScalarGridSpec(
            num_scalar_prefetch=0,
            grid=(B, n1),
            in_specs=[
                pl.BlockSpec((None, C, t1), lambda b, t: (b, 0, t)),
                pl.BlockSpec((C, 1), lambda b, t: (0, 0)),
                _SMEM,                                        # bt
            ],
            out_specs=pl.BlockSpec((None, 1, 1), lambda b, t: (b, 0, 0)),
            scratch_shapes=[pltpu.VMEM((C, 1), jnp.float32)],
        ),
        compiler_params=pltpu.CompilerParams(
            dimension_semantics=("parallel", "arbitrary"),
            vmem_limit_bytes=_clamp_vmem(2 * C * t1 * itemsize + (2 << 20))),
        cost_estimate=pl.CostEstimate(
            flops=2 * B * C * hw_pad,
            transcendentals=0,
            bytes_accessed=B * C * hw_pad * itemsize),
    )(x, wt_col, bt1)

    # Phase 2: kongjian sigmoid gate + tongdao scalar gate + max (streaming).
    gate_flat = gate.reshape(B)
    out = pl.pallas_call(
        _hebing_apply_kernel,
        out_shape=jax.ShapeDtypeStruct((B, C, hw_pad), dtype),
        grid_spec=pltpu.PrefetchScalarGridSpec(
            num_scalar_prefetch=0,
            grid=(B, n2),
            in_specs=[
                pl.BlockSpec((None, C, t2), lambda b, t: (b, 0, t)),
                pl.BlockSpec((C, 1), lambda b, t: (0, 0)),
                _SMEM,                                        # bk
                _SMEM,                                        # gate (B,)
            ],
            out_specs=pl.BlockSpec((None, C, t2), lambda b, t: (b, 0, t)),
        ),
        compiler_params=pltpu.CompilerParams(
            dimension_semantics=("parallel", "parallel"),
            vmem_limit_bytes=_clamp_vmem(4 * C * t2 * itemsize + (2 << 20))),
        cost_estimate=pl.CostEstimate(
            flops=5 * B * C * hw_pad,
            transcendentals=B * hw_pad,
            bytes_accessed=2 * B * C * hw_pad * itemsize),
    )(x, wk_col, bk1, gate_flat)

    if hw_pad != HW:
        out = out[:, :, :HW]
    return out.reshape(B, C, H, W)


def _reference(x, wk, bk, wt, bt):
    """Pure-JAX reference mirroring the PyTorch forward (NCHW)."""
    B, C, H, W = x.shape
    xf = x.astype(jnp.float32)
    # kongjian branch
    s = jax.nn.sigmoid(jnp.einsum('bchw,c->bhw', xf, wk.reshape(C)) + bk.reshape(()))
    u_k = xf * s[:, None, :, :]
    # tongdao branch
    m = jnp.mean(xf, axis=(2, 3))                                   # (B, C)
    t = jnp.maximum(m @ wt.reshape(C, 1) + bt.reshape(()), 0.0)     # (B, 1)
    u_t = xf * t[:, :, None, None]
    return jnp.maximum(u_t, u_k).astype(x.dtype)


if __name__ == "__main__":
    key = jax.random.PRNGKey(0)
    k_x, k_wk, k_bk, k_wt, k_bt = jax.random.split(key, 5)

    B, C, H, W = 2, 4, 16, 16
    x = jax.random.normal(k_x, (B, C, H, W), dtype=jnp.float32)

    # Conv2d(C -> 1, kernel 1x1, bias=True) parameters for both branches.
    wk = jax.random.normal(k_wk, (C,), dtype=jnp.float32) * 0.1   # kongjian weight
    bk = jax.random.normal(k_bk, (1,), dtype=jnp.float32) * 0.1   # kongjian bias
    wt = jax.random.normal(k_wt, (C,), dtype=jnp.float32) * 0.1   # tongdao weight
    bt = jax.random.normal(k_bt, (1,), dtype=jnp.float32) * 0.1   # tongdao bias

    out = hebing_forward(x, wk, bk, wt, bt)
    out = jax.block_until_ready(out)

    ref = _reference(x, wk, bk, wt, bt)
    assert out.shape == (B, C, H, W)
    assert jnp.allclose(out, ref, atol=1e-5, rtol=1e-5), "mismatch vs reference"

    print("KERNEL_OK")
</pallas_src>

<mosaic_0001>
module attributes {stable_mosaic.version = 11 : i64} {
  func.func @_hebing_fused_kernel(%arg0: i32, %arg1: memref<1x4x256xf32, #tpu.memory_space<vmem>>, %arg2: memref<4x1xf32, #tpu.memory_space<vmem>>, %arg3: memref<1xf32, #tpu.memory_space<smem>>, %arg4: memref<4x1xf32, #tpu.memory_space<vmem>>, %arg5: memref<1xf32, #tpu.memory_space<smem>>, %arg6: memref<1x4x256xf32, #tpu.memory_space<vmem>>) attributes {dimension_semantics = [#tpu.dimension_semantics<parallel>], iteration_bounds = array<i64: 2>, scalar_prefetch = 0 : i64, scratch_operands = 0 : i64, tpu.core_type = #tpu.core_type<tc>, window_params = [{transform_indices = @transform_0, window_bounds = array<i64: 1, 4, 256>}, {pipeline_mode = #tpu.pipeline_mode<synchronous>, transform_indices = @transform_1, window_bounds = array<i64: 4, 1>}, {transform_indices = @transform_2, window_bounds = array<i64: 1>}, {pipeline_mode = #tpu.pipeline_mode<synchronous>, transform_indices = @transform_3, window_bounds = array<i64: 4, 1>}, {transform_indices = @transform_4, window_bounds = array<i64: 1>}, {transform_indices = @transform_5, window_bounds = array<i64: 1, 4, 256>}]} {
    %c0 = arith.constant 0 : index
    %c0_0 = arith.constant 0 : index
    %c0_1 = arith.constant 0 : index
    %0 = vector.load %arg1[%c0, %c0_0, %c0_1] : memref<1x4x256xf32, #tpu.memory_space<vmem>>, vector<1x4x256xf32>
    %1 = vector.shape_cast %0 : vector<1x4x256xf32> to vector<4x256xf32>
    %cst = arith.constant dense<0.000000e+00> : vector<4xf32>
    %2 = vector.multi_reduction <add>, %1, %cst [1] : vector<4x256xf32> to vector<4xf32>
    %3 = vector.shape_cast %2 : vector<4xf32> to vector<4x1xf32>
    %c0_2 = arith.constant 0 : index
    %c0_3 = arith.constant 0 : index
    %4 = vector.load %arg4[%c0_2, %c0_3] : memref<4x1xf32, #tpu.memory_space<vmem>>, vector<4x1xf32>
    %5 = arith.mulf %3, %4 : vector<4x1xf32>
    %cst_4 = arith.constant dense<0.000000e+00> : vector<1xf32>
    %6 = vector.multi_reduction <add>, %5, %cst_4 [0] : vector<4x1xf32> to vector<1xf32>
    %7 = vector.shape_cast %6 : vector<1xf32> to vector<1x1xf32>
    %cst_5 = arith.constant 3.906250e-03 : f32
    %8 = vector.broadcast %cst_5 : f32 to vector<1x1xf32>
    %9 = arith.mulf %7, %8 : vector<1x1xf32>
    %c0_6 = arith.constant 0 : index
    %10 = memref.load %arg5[%c0_6] : memref<1xf32, #tpu.memory_space<smem>>
    %11 = vector.broadcast %10 : f32 to vector<1x1xf32>
    %12 = arith.addf %9, %11 : vector<1x1xf32>
    %cst_7 = arith.constant 0.000000e+00 : f32
    %13 = vector.broadcast %cst_7 : f32 to vector<1x1xf32>
    %14 = arith.maximumf %12, %13 : vector<1x1xf32>
    %c0_8 = arith.constant 0 : index
    %c0_9 = arith.constant 0 : index
    %15 = vector.load %arg2[%c0_8, %c0_9] : memref<4x1xf32, #tpu.memory_space<vmem>>, vector<4x1xf32>
    %16 = vector.broadcast %15 : vector<4x1xf32> to vector<4x256xf32>
    %17 = arith.mulf %1, %16 : vector<4x256xf32>
    %cst_10 = arith.constant dense<0.000000e+00> : vector<256xf32>
    %18 = vector.multi_reduction <add>, %17, %cst_10 [0] : vector<4x256xf32> to vector<256xf32>
    %19 = vector.shape_cast %18 : vector<256xf32> to vector<1x256xf32>
    %c0_11 = arith.constant 0 : index
    %20 = memref.load %arg3[%c0_11] : memref<1xf32, #tpu.memory_space<smem>>
    %21 = vector.broadcast %20 : f32 to vector<1x256xf32>
    %22 = arith.addf %19, %21 : vector<1x256xf32>
    %23 = arith.negf %22 : vector<1x256xf32>
    %24 = math.exp %23 : vector<1x256xf32>
    %cst_12 = arith.constant 1.000000e+00 : f32
    %25 = vector.broadcast %cst_12 : f32 to vector<1x256xf32>
    %26 = arith.addf %25, %24 : vector<1x256xf32>
    %27 = arith.divf %25, %26 : vector<1x256xf32>
    %28 = vector.broadcast %14 : vector<1x1xf32> to vector<4x256xf32>
    %29 = arith.mulf %1, %28 : vector<4x256xf32>
    %30 = vector.broadcast %27 : vector<1x256xf32> to vector<4x256xf32>
    %31 = arith.mulf %1, %30 : vector<4x256xf32>
    %32 = arith.maximumf %29, %31 : vector<4x256xf32>
    %c0_13 = arith.constant 0 : index
    %c0_14 = arith.constant 0 : index
    %c0_15 = arith.constant 0 : index
    %33 = vector.load %arg6[%c0_13, %c0_14, %c0_15] : memref<1x4x256xf32, #tpu.memory_space<vmem>>, vector<1x4x256xf32>
    %34 = vector.shape_cast %33 : vector<1x4x256xf32> to vector<4x256xf32>
    %35 = vector.shape_cast %32 : vector<4x256xf32> to vector<1x4x256xf32>
    tpu.vector_store %arg6[%c0_13, %c0_14, %c0_15], %35 {strides = array<i32>} : memref<1x4x256xf32, #tpu.memory_space<vmem>>, vector<1x4x256xf32>,
    return
  }
  func.func @transform_0(%arg0: i32) -> (i32, i32, i32) {
    %c0_i32 = arith.constant 0 : i32
    %c0_i32_0 = arith.constant 0 : i32
    %c0_i32_1 = arith.constant 0 : i32
    return %arg0, %c0_i32, %c0_i32_0 : i32, i32, i32
  }
  func.func @transform_1(%arg0: i32) -> (i32, i32) {
    %c0_i32 = arith.constant 0 : i32
    %c0_i32_0 = arith.constant 0 : i32
    %c0_i32_1 = arith.constant 0 : i32
    return %c0_i32, %c0_i32_0 : i32, i32
  }
  func.func @transform_2(%arg0: i32) -> i32 {
    %c0_i32 = arith.constant 0 : i32
    %c0_i32_0 = arith.constant 0 : i32
    return %c0_i32 : i32
  }
  func.func @transform_3(%arg0: i32) -> (i32, i32) {
    %c0_i32 = arith.constant 0 : i32
    %c0_i32_0 = arith.constant 0 : i32
    %c0_i32_1 = arith.constant 0 : i32
    return %c0_i32, %c0_i32_0 : i32, i32
  }
  func.func @transform_4(%arg0: i32) -> i32 {
    %c0_i32 = arith.constant 0 : i32
    %c0_i32_0 = arith.constant 0 : i32
    return %c0_i32 : i32
  }
  func.func @transform_5(%arg0: i32) -> (i32, i32, i32) {
    %c0_i32 = arith.constant 0 : i32
    %c0_i32_0 = arith.constant 0 : i32
    %c0_i32_1 = arith.constant 0 : i32
    return %arg0, %c0_i32, %c0_i32_0 : i32, i32, i32
  }
}

</mosaic_0001>

<llo_original>
// kernel: tpu_custom_call.1
$region0: #{tpu_custom_call.1}
  #allocation0 [shape = 'u32[]', space=smem, size = 0x4, offset = 0x4, fixed_abs, tag = 'smem constant byte address 0x4 - core index']
  #allocation1 [shape = 'u32[72,128]{1,0:T(1,128)}', space=vmem, size = 0x9000, scoped, tag = 'internal scratch']
  #allocation2 [shape = 'f32[1]{0:T(128)S(6)}', space=smem, size = 0x200, scoped, tag = 'scoped memory for tpu_custom_call.1']
  #allocation3 [shape = 'f32[1]{0:T(128)S(6)}', space=smem, size = 0x200, scoped, tag = 'scoped memory for tpu_custom_call.1']
  %s0 = inlined_call_operand.hbm [shape: f32[2,4,256], index: 0, kind: input, shape index: {}]
  %s1 = inlined_call_operand.vmem [shape: f32[4,1], index: 1, kind: input, shape index: {}]
  %s2 = inlined_call_operand.<no memory space> [shape: f32[1], index: 2, kind: input, shape index: {}]
  %s3 = inlined_call_operand.vmem [shape: f32[4,1], index: 3, kind: input, shape index: {}]
  %s4 = inlined_call_operand.<no memory space> [shape: f32[1], index: 4, kind: input, shape index: {}]
  %s5 = inlined_call_operand.hbm [shape: f32[2,4,256], index: 5, kind: output, shape index: {}]
  %s6 = sld [smem:[#allocation0]]
  $region57: #{tpu_custom_call.1} parent=0
    _
  %s8 = ssub.s32 1, %s6
  %s9 = scalar_select 0, %s8, %s6
  %10 = sst [smem:[#allocation2]] %s2
  %11 = sst [smem:[#allocation3]] %s4
  $region1: #{tpu_custom_call.1} parent=0
    #allocation4 [shape = 'u8[8192]{0}', space=vmem, size = 0x2000, scoped, tag = 'input window, operand 0']
    #allocation5 [shape = 's32[2]{0}', space=sflag, size = 0x8, scoped, tag = 'scoped memory for tpu_custom_call.1']
    #allocation6 [shape = 's32[2]{0}', space=sflag, size = 0x8, scoped, tag = 'scoped memory for tpu_custom_call.1']
    #allocation7 [shape = 'u8[8192]{0}', space=vmem, size = 0x2000, scoped, tag = 'output window, operand 0']
    %12 = vsyncpa [#allocation5], 0
    %s13 = scalar_lea.sflag [#allocation5], 1
    %14 = vsyncpa %s13, 0
    %15 = vsyncpa [#allocation6], 0
    %s16 = scalar_lea.sflag [#allocation6], 1
    %17 = vsyncpa %s16, 0
    loop: start=0, step=1, limit=4
    $region2: #{tpu_custom_call.1} parent=1 // loop_pre_header
      _
    $region3: #{tpu_custom_call.1} parent=1 // loop_header
      %s19 = sphi 0, %s23
      %p20 = scmp.ge.s32.totalorder %s19, 4
      %s29 = sphi 0, %s31
      %s32 = sphi 0, %s29
      %s33 = sphi 0, %s32
      %s49 = sphi 0, %s33
      %s53 = sphi 0, %s53
      %s55 = sphi 0, %s53
      %s56 = sphi 0, %s55
      %s70 = sphi 0, %s56
      %s74 = sphi 0, %s74
      %s76 = sphi 0, %s74
      %s77 = sphi 0, %s76
      %s91 = sphi 0, %s77
      %s95 = sphi 0, %s95
      %s97 = sphi 0, %s95
      %s98 = sphi 0, %s97
      %s112 = sphi 0, %s98
      %s116 = sphi 0, %s116
      %s118 = sphi 0, %s116
      %s119 = sphi 0, %s118
      %s133 = sphi 0, %s119
      %s139 = sphi 0, %s141
      %s142 = sphi 0, %s139
      %s143 = sphi 0, %s142
      %s159 = sphi 0, %s143
    $region4: #{tpu_custom_call.1} parent=1 // loop_header_branch
      %22 = sbr.rel (%p20) target = $region8
    $region5: #{tpu_custom_call.1} parent=1 // loop_body
      %s24 = ssub.s32 %s19, 1
      %s25 = ssub.s32 %s19, 2
      %s26 = sadd.s32 %s19, 1
      %s27 = ssub.s32 %s19, %s26
      %p28 = scmp.eq.s32.totalorder %s27, 0
      %s30 = sadd.s32 %s29, 1
      %s31 = scalar_select %p28, %s29, %s30
      %p34 = pneg %p28
      %p35 = scmp.eq.s32.totalorder %s19, 1
      %p36 = por %p34, %p35
      %p37 = scmp.ne.s32.totalorder %s29, %s32
      %p38 = scmp.eq.s32.totalorder %s19, 0
      %p39 = por %p37, %p38
      %p40 = scmp.ne.s32.totalorder %s29, %s32
      %p41 = scmp.eq.s32.totalorder %s24, 1
      %p42 = por %p40, %p41
      %p43 = scmp.ne.s32.totalorder %s32, %s33
      %p44 = scmp.eq.s32.totalorder %s24, 0
      %p45 = por %p43, %p44
      %p46 = scmp.ne.s32.totalorder %s32, %s33
      %p47 = scmp.eq.s32.totalorder %s25, 1
      %p48 = por %p46, %p47
      %p50 = scmp.ne.s32.totalorder %s33, %s49
      %p51 = scmp.eq.s32.totalorder %s25, 0
      %p52 = por %p50, %p51
      %s54 = sadd.s32 %s53, 1
      %p57 = scmp.eq.s32.totalorder %s19, 1
      %p58 = scmp.ne.s32.totalorder %s53, %s55
      %p59 = scmp.eq.s32.totalorder %s19, 0
      %p60 = por %p58, %p59
      %p61 = scmp.ne.s32.totalorder %s53, %s55
      %p62 = scmp.eq.s32.totalorder %s24, 1
      %p63 = por %p61, %p62
      %p64 = scmp.ne.s32.totalorder %s55, %s56
      %p65 = scmp.eq.s32.totalorder %s24, 0
      %p66 = por %p64, %p65
      %p67 = scmp.ne.s32.totalorder %s55, %s56
      %p68 = scmp.eq.s32.totalorder %s25, 1
      %p69 = por %p67, %p68
      %p71 = scmp.ne.s32.totalorder %s56, %s70
      %p72 = scmp.eq.s32.totalorder %s25, 0
      %p73 = por %p71, %p72
      %s75 = sadd.s32 %s74, 1
      %p78 = scmp.eq.s32.totalorder %s19, 1
      %p79 = scmp.ne.s32.totalorder %s74, %s76
      %p80 = scmp.eq.s32.totalorder %s19, 0
      %p81 = por %p79, %p80
      %p82 = scmp.ne.s32.totalorder %s74, %s76
      %p83 = scmp.eq.s32.totalorder %s24, 1
      %p84 = por %p82, %p83
      %p85 = scmp.ne.s32.totalorder %s76, %s77
      %p86 = scmp.eq.s32.totalorder %s24, 0
      %p87 = por %p85, %p86
      %p88 = scmp.ne.s32.totalorder %s76, %s77
      %p89 = scmp.eq.s32.totalorder %s25, 1
      %p90 = por %p88, %p89
      %p92 = scmp.ne.s32.totalorder %s77, %s91
      %p93 = scmp.eq.s32.totalorder %s25, 0
      %p94 = por %p92, %p93
      %s96 = sadd.s32 %s95, 1
      %p99 = scmp.eq.s32.totalorder %s19, 1
      %p100 = scmp.ne.s32.totalorder %s95, %s97
      %p101 = scmp.eq.s32.totalorder %s19, 0
      %p102 = por %p100, %p101
      %p103 = scmp.ne.s32.totalorder %s95, %s97
      %p104 = scmp.eq.s32.totalorder %s24, 1
      %p105 = por %p103, %p104
      %p106 = scmp.ne.s32.totalorder %s97, %s98
      %p107 = scmp.eq.s32.totalorder %s24, 0
      %p108 = por %p106, %p107
      %p109 = scmp.ne.s32.totalorder %s97, %s98
      %p110 = scmp.eq.s32.totalorder %s25, 1
      %p111 = por %p109, %p110
      %p113 = scmp.ne.s32.totalorder %s98, %s112
      %p114 = scmp.eq.s32.totalorder %s25, 0
      %p115 = por %p113, %p114
      %s117 = sadd.s32 %s116, 1
      %p120 = scmp.eq.s32.totalorder %s19, 1
      %p121 = scmp.ne.s32.totalorder %s116, %s118
      %p122 = scmp.eq.s32.totalorder %s19, 0
      %p123 = por %p121, %p122
      %p124 = scmp.ne.s32.totalorder %s116, %s118
      %p125 = scmp.eq.s32.totalorder %s24, 1
      %p126 = por %p124, %p125
      %p127 = scmp.ne.s32.totalorder %s118, %s119
      %p128 = scmp.eq.s32.totalorder %s24, 0
      %p129 = por %p127, %p128
      %p130 = scmp.ne.s32.totalorder %s118, %s119
      %p131 = scmp.eq.s32.totalorder %s25, 1
      %p132 = por %p130, %p131
      %p134 = scmp.ne.s32.totalorder %s119, %s133
      %p135 = scmp.eq.s32.totalorder %s25, 0
      %p136 = por %p134, %p135
      %s137 = ssub.s32 %s19, %s26
      %p138 = scmp.eq.s32.totalorder %s137, 0
      %s140 = sadd.s32 %s139, 1
      %s141 = scalar_select %p138, %s139, %s140
      %p144 = pneg %p138
      %p145 = scmp.eq.s32.totalorder %s19, 1
      %p146 = por %p144, %p145
      %p147 = scmp.ne.s32.totalorder %s139, %s142
      %p148 = scmp.eq.s32.totalorder %s19, 0
      %p149 = por %p147, %p148
      %p150 = scmp.ne.s32.totalorder %s139, %s142
      %p151 = scmp.eq.s32.totalorder %s24, 1
      %p152 = por %p150, %p151
      %p153 = scmp.ne.s32.totalorder %s142, %s143
      %p154 = scmp.eq.s32.totalorder %s24, 0
      %p155 = por %p153, %p154
      %p156 = scmp.ne.s32.totalorder %s142, %s143
      %p157 = scmp.eq.s32.totalorder %s25, 1
      %p158 = por %p156, %p157
      %p160 = scmp.ne.s32.totalorder %s143, %s159
      %p161 = scmp.eq.s32.totalorder %s25, 0
      %p162 = por %p160, %p161
      %p163 = scmp.le.s32.totalorder 1, %s19
      %p164 = scmp.lt.s32.totalorder %s19, 3
      %p165 = pnand %p163, %p164
      %p166 = pneg %p165
      // Predicated region
      $region9: #{tpu_custom_call.1} parent=5 // pred_check
        _
      $region10: #{tpu_custom_call.1} parent=5 // pred_check_branch
        %168 = sbr.rel (%p165) target = $region12
      $region11: #{tpu_custom_call.1} parent=5 // pred_region
        %s169 = ssub.s32 %s19, 1
        // Predicated region
        $region13: #{tpu_custom_call.1} parent=11 // pred_check
          %p170 = pneg %p66
        $region14: #{tpu_custom_call.1} parent=11 // pred_check_branch
          %172 = sbr.rel (%p170) target = $region16
        $region15: #{tpu_custom_call.1} parent=11 // pred_region
          _
        $region16: #{tpu_custom_call.1} parent=11 // pred_fallthru
          _
        // Predicated region
        $region17: #{tpu_custom_call.1} parent=11 // pred_check
          %p173 = pneg %p87
        $region18: #{tpu_custom_call.1} parent=11 // pred_check_branch
          %175 = sbr.rel (%p173) target = $region20
        $region19: #{tpu_custom_call.1} parent=11 // pred_region
          _
        $region20: #{tpu_custom_call.1} parent=11 // pred_fallthru
          _
        // Predicated region
        $region21: #{tpu_custom_call.1} parent=11 // pred_check
          %p176 = pneg %p108
        $region22: #{tpu_custom_call.1} parent=11 // pred_check_branch
          %178 = sbr.rel (%p176) target = $region24
        $region23: #{tpu_custom_call.1} parent=11 // pred_region
          _
        $region24: #{tpu_custom_call.1} parent=11 // pred_fallthru
          _
        // Predicated region
        $region25: #{tpu_custom_call.1} parent=11 // pred_check
          %p179 = pneg %p129
        $region26: #{tpu_custom_call.1} parent=11 // pred_check_branch
          %181 = sbr.rel (%p179) target = $region28
        $region27: #{tpu_custom_call.1} parent=11 // pred_region
          _
        $region28: #{tpu_custom_call.1} parent=11 // pred_fallthru
          _
      $region12: #{tpu_custom_call.1} parent=5 // pred_fallthru
        _
      %p182 = scmp.lt.s32.totalorder %s19, 2
      // Predicated region
      $region29: #{tpu_custom_call.1} parent=5 // pred_check
        %p183 = pneg %p182
      $region30: #{tpu_custom_call.1} parent=5 // pred_check_branch
        %185 = sbr.rel (%p183) target = $region32
      $region31: #{tpu_custom_call.1} parent=5 // pred_region
        // Predicated region
        $region33: #{tpu_custom_call.1} parent=31 // pred_check
          %p186 = pneg %p39
        $region34: #{tpu_custom_call.1} parent=31 // pred_check_branch
          %188 = sbr.rel (%p186) target = $region36
        $region35: #{tpu_custom_call.1} parent=31 // pred_region
          %s189 = sand.u32 %s29, 1
          %s190 = scalar_lea.sflag [#allocation5], %s189
          %s191 = sand.u32 %s29, 1
          %s192 = smul.addr %s191, 8
          %s193 = scalar_lea.vmem [#allocation4], %s192
          %195 = vsyncadd %s190, 0
          %s196 = smul.addr %s19, 2
          %s197 = smul.addr %s196, 4
          %s198 = scalar_lea.hbm %s0, %s197
          %s200 = sshll.u32 %s198, 4
          %s201 = int_to_ptr.hbm [resolvable:$true] %s200
          %s202 = sshll.u32 %s193, 4
          %s203 = int_to_ptr.vmem [resolvable:$true] %s202
          %205 = dma.hbm_to_vmem [thread:$0]  %s201, 128, %s203, %s190
        $region36: #{tpu_custom_call.1} parent=31 // pred_fallthru
          _
      $region32: #{tpu_custom_call.1} parent=5 // pred_fallthru
        _
      %p206 = scmp.le.s32.totalorder 1, %s19
      %p207 = scmp.lt.s32.totalorder %s19, 3
      %p208 = pnand %p206, %p207
      %p209 = pneg %p208
      // Predicated region
      $region37: #{tpu_custom_call.1} parent=5 // pred_check
        _
      $region38: #{tpu_custom_call.1} parent=5 // pred_check_branch
        %211 = sbr.rel (%p208) target = $region40
      $region39: #{tpu_custom_call.1} parent=5 // pred_region
        %s212 = ssub.s32 %s19, 1
        %s213 = sand.u32 %s32, 1
        %s214 = scalar_lea.sflag [#allocation5], %s213
        %s215 = sand.u32 %s32, 1
        %s216 = smul.addr %s215, 8
        %s217 = scalar_lea.vmem [#allocation4], %s216
        // Predicated region
        $region41: #{tpu_custom_call.1} parent=39 // pred_check
          %p218 = pneg %p45
        $region42: #{tpu_custom_call.1} parent=39 // pred_check_branch
          %220 = sbr.rel (%p218) target = $region44
        $region43: #{tpu_custom_call.1} parent=39 // pred_region
          %222 = dma.done %s214, 128
        $region44: #{tpu_custom_call.1} parent=39 // pred_fallthru
          _
        %s223 = sand.u32 %s32, 1
        %s224 = scalar_lea.sflag [#allocation5], %s223
        %s225 = sand.u32 %s32, 1
        %s226 = smul.addr %s225, 8
        %s227 = scalar_lea.vmem [#allocation4], %s226
        %p228 = pneg %p45
        %p229 = pneg %p42
        %p230 = pneg %p66
        %p231 = pneg %p63
        %p232 = pneg %p87
        %p233 = pneg %p84
        %p234 = pneg %p108
        %p235 = pneg %p105
        %p236 = pneg %p129
        %p237 = pneg %p126
        %p238 = pneg %p155
        %p239 = pneg %p152
        %s240 = sand.u32 %s142, 1
        %s241 = scalar_lea.sflag [#allocation6], %s240
        %s242 = sand.u32 %s142, 1
        %s243 = smul.addr %s242, 8
        %s244 = scalar_lea.vmem [#allocation7], %s243
        %v245 = vld [vmem:[%s217] sm:$0xff]
        %247 = vst [vmem:[#allocation1] ss:$2 sm:$0xff] %v245
        %v248 = vld.sshfl [vmem:[#allocation1] sm:$0xff pattern:$0x75316420]
        %v249 = vld.sshfl [vmem:[#allocation1 + $0x8] sm:$0xff pattern:$0x75316420]
        %vm252 = vcmask 1043456
        %v253 = vsel %vm252, %v248, 0.0
        %v254 = vsel %vm252, %v249, 0.0
        %v255 = vadd.f32 %v253, %v254
        %256 = vadd.xlane.f32.xlu0 %v255
        %v257 = vpop.xlane.xlu0 %256
        %v258 = vld [vmem:[%s3] sm:$0xf]
        %v259 = vmul.f32 %v257, %v258
        %vm260 = vcmask 3072
        %v261 = vsel %vm260, %v259, 0.0
        %v262 = vrot.slane %v261, 4
        %v263 = vadd.f32 %v261, %v262
        %v264 = vrot.slane %v263, 2
        %v265 = vadd.f32 %v263, %v264
        %v266 = vrot.slane %v265, 1
        %v267 = vadd.f32 %v265, %v266
        %v268 = vmul.f32 %v267, 0.00390625
        %s269 = sld [smem:[#allocation3]]
        %v270 = vstv %s269
        %v271 = vadd.f32 %v268, %v270
        %v272 = vmax.f32 %v271, 0.0
        %v273 = vld [vmem:[%s1] sm:$0xf]
        %275 = vset.pattern.permute.xlu0 0
        %276 = vperm.xlu0 %275, %v273
        %v277 = vpop.permute.xlu0 %276
        %v279 = vunpack.c.l.s4 839922192
        %v280 = vunpack.c.0.s8 %v279
        %v281 = vperm.slane %v277, %v280
        %v283 = vmul.f32 %v245, %v281
        %285 = vst [vmem:[#allocation1] ss:$2 sm:$0xff] %v283
        %v286 = vld.sshfl [vmem:[#allocation1] sm:$0xff pattern:$0x75316420]
        %v287 = vld.sshfl [vmem:[#allocation1 + $0x8] sm:$0xff pattern:$0x75316420]
        %v290 = vsel %vm252, %v286, 0.0
        %v291 = vrot.slane %v290, 4
        %v292 = vadd.f32 %v290, %v291
        %v293 = vrot.slane %v292, 2
        %v294 = vadd.f32 %v292, %v293
        %v295 = vrot.slane %v294, 1
        %v296 = vadd.f32 %v294, %v295
        %v297 = vsel %vm252, %v287, 0.0
        %v298 = vrot.slane %v297, 4
        %v299 = vadd.f32 %v297, %v298
        %v300 = vrot.slane %v299, 2
        %v301 = vadd.f32 %v299, %v300
        %v302 = vrot.slane %v301, 1
        %v303 = vadd.f32 %v301, %v302
        %s304 = sld [smem:[#allocation2]]
        %v305 = vstv %s304
        %v306 = vadd.f32 %v296, %v305
        %v307 = vadd.f32 %v303, %v305
        %v308 = vxor.u32 %v306, 2147483648
        %v309 = vxor.u32 %v307, 2147483648
        %v310 = vmul.f32 %v308, 1.442695
        %v311 = vpow.pop %v310
        %v312 = vmul.f32 %v309, 1.442695
        %v313 = vpow.pop %v312
        %v314 = vadd.f32 %v311, 1.0
        %v315 = vadd.f32 %v313, 1.0
        %v316 = vrcp.pop %v314
        %v317 = vmul.f32 %v314, %v316
        %v318 = vsub.f32 1.0, %v317
        %v319 = vmul.f32 %v316, %v318
        %v320 = vadd.f32 %v316, %v319
        %vm321 = vweird.f32 %v314
        %vm322 = vweird.f32 %v316
        %vm323 = vmor %vm321, %vm322
        %v324 = vsel %vm323, %v316, %v320
        %v325 = vand.u32 2147483647, %v314
        %vm326 = vcmp.eq.f32.partialorder %v325, 8.507059e+37
        %v327 = vand.u32 %v314, 2147483648
        %v328 = vor.u32 1.1754944e-38, %v327
        %v329 = vsel %vm326, %v328, %v324
        %v330 = vmul.f32 1.0, %v329
        %v331 = vrcp.pop %v315
        %v332 = vmul.f32 %v315, %v331
        %v333 = vsub.f32 1.0, %v332
        %v334 = vmul.f32 %v331, %v333
        %v335 = vadd.f32 %v331, %v334
        %vm336 = vweird.f32 %v315
        %vm337 = vweird.f32 %v331
        %vm338 = vmor %vm336, %vm337
        %v339 = vsel %vm338, %v331, %v335
        %v340 = vand.u32 2147483647, %v315
        %vm341 = vcmp.eq.f32.partialorder %v340, 8.507059e+37
        %v342 = vand.u32 %v315, 2147483648
        %v343 = vor.u32 1.1754944e-38, %v342
        %v344 = vsel %vm341, %v343, %v339
        %v345 = vmul.f32 1.0, %v344
        %347 = vset.pattern.permute.xlu0 0
        %348 = vperm.xlu0 %347, %v272
        %v349 = vpop.permute.xlu0 %348
        %v351 = vmul.f32 %v245, %v349
        %v354 = vrot.slane %v345, 4
        %v355 = vsel %vm252, %v330, %v354
        %v357 = vmul.f32 %v245, %v355
        %v358 = vmax.f32 %v351, %v357
        %359 = vst [vmem:[%s244] sm:$0xff] %v358
        %s360 = sand.u32 %s142, 1
        %s361 = scalar_lea.sflag [#allocation6], %s360
        %s362 = sand.u32 %s142, 1
        %s363 = smul.addr %s362, 8
        %s364 = scalar_lea.vmem [#allocation7], %s363
        // Predicated region
        $region45: #{tpu_custom_call.1} parent=39 // pred_check
          %p365 = pneg %p152
        $region46: #{tpu_custom_call.1} parent=39 // pred_check_branch
          %367 = sbr.rel (%p365) target = $region48
        $region47: #{tpu_custom_call.1} parent=39 // pred_region
          %369 = vsyncadd %s361, 0
          %s370 = smul.addr %s24, 2
          %s371 = smul.addr %s370, 4
          %s372 = scalar_lea.hbm %s5, %s371
          %s374 = sshll.u32 %s364, 4
          %s375 = int_to_ptr.vmem [resolvable:$true] %s374
          %s376 = sshll.u32 %s372, 4
          %s377 = int_to_ptr.hbm [resolvable:$true] %s376
          %379 = dma.vmem_to_hbm [thread:$0]  %s375, 128, %s377, %s361
        $region48: #{tpu_custom_call.1} parent=39 // pred_fallthru
          _
      $region40: #{tpu_custom_call.1} parent=5 // pred_fallthru
        _
      %p380 = scmp.le.s32.totalorder 2, %s19
      // Predicated region
      $region49: #{tpu_custom_call.1} parent=5 // pred_check
        %p381 = pneg %p380
      $region50: #{tpu_custom_call.1} parent=5 // pred_check_branch
        %383 = sbr.rel (%p381) target = $region52
      $region51: #{tpu_custom_call.1} parent=5 // pred_region
        %s384 = ssub.s32 %s19, 2
        // Predicated region
        $region53: #{tpu_custom_call.1} parent=51 // pred_check
          %p385 = pneg %p158
        $region54: #{tpu_custom_call.1} parent=51 // pred_check_branch
          %387 = sbr.rel (%p385) target = $region56
        $region55: #{tpu_custom_call.1} parent=51 // pred_region
          %s388 = sand.u32 %s143, 1
          %s389 = scalar_lea.sflag [#allocation6], %s388
          %s390 = sand.u32 %s143, 1
          %s391 = smul.addr %s390, 8
          %s392 = scalar_lea.vmem [#allocation7], %s391
          %394 = dma.done %s389, 128
        $region56: #{tpu_custom_call.1} parent=51 // pred_fallthru
          _
      $region52: #{tpu_custom_call.1} parent=5 // pred_fallthru
        _
    $region6: #{tpu_custom_call.1} parent=1 // loop_footer
      %s23 = sadd.s32 1, %s19
    $region7: #{tpu_custom_call.1} parent=1 // loop_footer_branch
      %18 = sbr.rel target = $region3
    $region8: #{tpu_custom_call.1} parent=1 // loop_exit
      _
    %395 = vsyncpa [#allocation5], 1
    %s396 = scalar_lea.sflag [#allocation5], 1
    %397 = vsyncpa %s396, 1
    %398 = vsyncpa [#allocation6], 1
    %s399 = scalar_lea.sflag [#allocation6], 1
    %400 = vsyncpa %s399, 1

</llo_original>
